<compile_context>
chip_gen: v5e
topology: v5e:2x2
jax: 0.10.0
libtpu: 0.0.40
codegen_flags: <defaults>
</compile_context>

<pallas_src>
import functools

import jax
import jax.numpy as jnp
from jax import lax
from jax.experimental import pallas as pl
from jax.experimental.pallas import tpu as pltpu


def _round_up(x, m):
    return ((x + m - 1) // m) * m


def _spatial_self_attn_kernel(xb_ref, xr_ref, w_ref, b_ref, mask_ref, gamma_ref,
                              o_ref, fg_ref, *, c8p, tq, apply_mask):
    # xb_ref:    (Cp, Np)     bf16  full spatial map for this batch element
    # xr_ref:    (Cp, tq)     f32   residual tile (this query block)
    # w_ref:     (2*c8p, Cp)  bf16  stacked [Wf ; Wg] (zero-padded rows/cols)
    # b_ref:     (2*c8p, 1)   f32   stacked [bf ; bg]
    # mask_ref:  (Np, 1)      f32   additive key mask (0 valid / -1e30 padded)
    # gamma_ref: (1,)         f32   SMEM scalar
    # o_ref:     (Cp, tq)     f32   output tile (one query block)
    # fg_ref:    (2*c8p, Np)  bf16  scratch: [f ; g] projections (per batch)
    q = pl.program_id(1)

    @pl.when(q == 0)
    def _():
        # Fused f/g projection, once per batch element (bf16 MXU, f32 acc).
        fg = (jnp.dot(w_ref[...], xb_ref[...],
                      preferred_element_type=jnp.float32) + b_ref[...])
        fg_ref[...] = fg.astype(jnp.bfloat16)

    qs = pl.multiple_of(q * tq, tq)

    f_blk = fg_ref[pl.ds(0, c8p), pl.ds(qs, tq)]          # (c8p, tq) bf16
    g_all = fg_ref[pl.ds(c8p, c8p), :]                    # (c8p, Np) bf16

    # Transposed scores: s_t[j, i] = f[:, i] . g[:, j]  ->  (Np, tq)
    # (contracting dim 0 of both operands; no explicit transpose emitted)
    s_t = lax.dot_general(g_all, f_blk, (((0,), (0,)), ((), ())),
                          preferred_element_type=jnp.float32)
    if apply_mask:
        s_t = s_t + mask_ref[...]                         # additive key mask

    # Softmax over keys (axis 0 = sublanes), kept unnormalized.
    m = jnp.max(s_t, axis=0, keepdims=True)               # (1, tq)
    e = jnp.exp(s_t - m)                                  # (Np, tq) f32
    l = jnp.sum(e, axis=0, keepdims=True)                 # (1, tq)

    # out_un[c, i] = sum_j x[c, j] * e[j, i]  (bf16 operands, f32 accumulate)
    out_un = jnp.dot(xb_ref[...], e.astype(jnp.bfloat16),
                     preferred_element_type=jnp.float32)  # (Cp, tq)
    out = out_un * pl.reciprocal(l, approx=True)          # fold softmax denom

    # Residual add in exact f32.
    o_ref[...] = (gamma_ref[0] * out + xr_ref[...]).astype(o_ref.dtype)


def spatial_self_attention(x, wf, bf, wg, bg, gamma, *, tq=None,
                           vmem_limit_bytes=48 * 1024 * 1024):
    """x: (B, C, H, W) float32. wf/wg: (C//8, C), bf/bg: (C//8,), gamma: (1,)."""
    B, C, H, W = x.shape
    assert C >= 8, "in_channels must be >= 8 (module uses C // 8 channels)"
    C8 = C // 8
    N = H * W

    Cp = _round_up(C, 8)
    C8p = _round_up(max(C8, 16), 16)          # bf16-friendly sublane padding
    Np = _round_up(N, 128)                    # lane-dense key/query axis
    if tq is None:
        # 256-wide tiles fill the v6e/v7x MXU; 128 is already full-width on v5e
        # and the only option for small (<=128-padded) spatial maps.
        tq = 256 if Np % 256 == 0 else 128
    if Np % tq != 0 or tq % 128 != 0:
        tq = 128

    # --- wrapper-side layout prep (pure data movement) -----------------------
    x_flat = x.reshape(B, C, N).astype(jnp.float32)
    x_pad = jnp.pad(x_flat, ((0, 0), (0, Cp - C), (0, Np - N)))   # f32 residual
    x_bf16 = x_pad.astype(jnp.bfloat16)                           # MXU operand

    w_stack = jnp.zeros((2 * C8p, Cp), dtype=jnp.float32)
    w_stack = w_stack.at[:C8, :C].set(wf.astype(jnp.float32))
    w_stack = w_stack.at[C8p:C8p + C8, :C].set(wg.astype(jnp.float32))
    w_stack = w_stack.astype(jnp.bfloat16)

    b_stack = jnp.zeros((2 * C8p, 1), dtype=jnp.float32)
    b_stack = b_stack.at[:C8, 0].set(bf.astype(jnp.float32))
    b_stack = b_stack.at[C8p:C8p + C8, 0].set(bg.astype(jnp.float32))

    apply_mask = (N != Np)
    key_mask = jnp.where(jnp.arange(Np, dtype=jnp.int32)[:, None] < N,
                         jnp.float32(0.0), jnp.float32(-1e30))     # (Np, 1)

    gamma1 = gamma.reshape(1).astype(jnp.float32)

    # --- cost estimate (projections + scores + value matmul) -----------------
    flops = B * (2 * (2 * C8p) * Cp * Np        # projections
                 + 2 * C8p * Np * Np            # scores
                 + 2 * Cp * Np * Np)            # weighted sum
    bytes_accessed = (B * Cp * Np * 2           # x (bf16)
                      + B * Cp * Np * 4         # residual tiles (f32)
                      + B * Cp * Np * 4         # output (f32)
                      + 2 * C8p * (Cp * 2 + 4)  # weights + bias
                      + Np * 4)                 # key mask
    cost = pl.CostEstimate(flops=flops,
                           transcendentals=B * Np * Np,
                           bytes_accessed=bytes_accessed)

    kernel = functools.partial(_spatial_self_attn_kernel,
                               c8p=C8p, tq=tq, apply_mask=apply_mask)

    out_pad = pl.pallas_call(
        kernel,
        out_shape=jax.ShapeDtypeStruct((B, Cp, Np), x.dtype),
        grid_spec=pltpu.PrefetchScalarGridSpec(
            num_scalar_prefetch=0,
            grid=(B, Np // tq),
            in_specs=[
                pl.BlockSpec((None, Cp, Np), lambda b, q: (b, 0, 0)),   # x bf16
                pl.BlockSpec((None, Cp, tq), lambda b, q: (b, 0, q)),   # resid
                pl.BlockSpec((2 * C8p, Cp), lambda b, q: (0, 0)),       # [Wf;Wg]
                pl.BlockSpec((2 * C8p, 1), lambda b, q: (0, 0)),        # [bf;bg]
                pl.BlockSpec((Np, 1), lambda b, q: (0, 0)),             # mask
                pl.BlockSpec(memory_space=pltpu.MemorySpace.SMEM),      # gamma
            ],
            out_specs=pl.BlockSpec((None, Cp, tq), lambda b, q: (b, 0, q)),
            scratch_shapes=[
                pltpu.VMEM((2 * C8p, Np), jnp.bfloat16),   # [f ; g] projections
            ],
        ),
        compiler_params=pltpu.CompilerParams(
            dimension_semantics=("parallel", "arbitrary"),
            vmem_limit_bytes=vmem_limit_bytes),
        cost_estimate=cost,
    )(x_bf16, x_pad, w_stack, b_stack, key_mask, gamma1)

    return out_pad[:, :C, :N].reshape(B, C, H, W)


def _reference(x, wf, bf, wg, bg, gamma):
    B, C, H, W = x.shape
    N = H * W
    xf = x.reshape(B, C, N)
    f = jnp.einsum('oc,bcn->bon', wf, xf) + bf[None, :, None]
    g = jnp.einsum('oc,bcn->bon', wg, xf) + bg[None, :, None]
    att = jax.nn.softmax(jnp.einsum('bon,bom->bnm', f, g), axis=-1)
    out = jnp.einsum('bcn,bmn->bcm', xf, att)          # h @ A^T
    out = gamma * out + xf
    return out.reshape(B, C, H, W)


if __name__ == "__main__":
    B, C, H, W = 2, 16, 8, 8          # in_channels must be >= 8 (C // 8 conv)
    C8 = C // 8

    key = jax.random.PRNGKey(0)
    kx, kwf, kbf, kwg, kbg = jax.random.split(key, 5)

    x = jax.random.normal(kx, (B, C, H, W), dtype=jnp.float32)
    # Conv2d(C, C//8, kernel_size=1) weights: (C8, C, 1, 1) -> stored as (C8, C)
    wf = jax.random.normal(kwf, (C8, C), dtype=jnp.float32) * 0.1
    bf = jax.random.normal(kbf, (C8,), dtype=jnp.float32) * 0.1
    wg = jax.random.normal(kwg, (C8, C), dtype=jnp.float32) * 0.1
    bg = jax.random.normal(kbg, (C8,), dtype=jnp.float32) * 0.1
    # nn.Parameter(torch.zeros(1)) -> gamma init is 0; use a nonzero value here
    # so the attention path is actually exercised numerically.
    gamma = jnp.array([0.5], dtype=jnp.float32)

    out = spatial_self_attention(x, wf, bf, wg, bg, gamma)
    out = jax.block_until_ready(out)

    ref = _reference(x, wf, bf, wg, bg, gamma)
    assert out.shape == (B, C, H, W)
    # Tolerance reflects bf16 MXU operands (f32 accumulation / f32 softmax math
    # / exact f32 residual) plus the approximate softmax reciprocal.
    err = float(jnp.max(jnp.abs(out - ref)))
    assert jnp.allclose(out, ref, atol=2e-2, rtol=2e-2), \
        f"mismatch vs reference (max abs err {err})"

    print("KERNEL_OK")
</pallas_src>

<mosaic_0001>
module attributes {stable_mosaic.version = 11 : i64} {
  func.func @_spatial_self_attn_kernel(%arg0: i32, %arg1: i32, %arg2: memref<1x16x128xbf16, #tpu.memory_space<vmem>>, %arg3: memref<1x16x128xf32, #tpu.memory_space<vmem>>, %arg4: memref<32x16xbf16, #tpu.memory_space<vmem>>, %arg5: memref<32x1xf32, #tpu.memory_space<vmem>>, %arg6: memref<128x1xf32, #tpu.memory_space<vmem>>, %arg7: memref<1xf32, #tpu.memory_space<smem>>, %arg8: memref<1x16x128xf32, #tpu.memory_space<vmem>>, %arg9: memref<32x128xbf16, #tpu.memory_space<vmem>>) attributes {dimension_semantics = [#tpu.dimension_semantics<parallel>, #tpu.dimension_semantics<arbitrary>], iteration_bounds = array<i64: 2, 1>, scalar_prefetch = 0 : i64, scratch_operands = 1 : i64, tpu.core_type = #tpu.core_type<tc>, window_params = [{transform_indices = @transform_0, window_bounds = array<i64: 1, 16, 128>}, {transform_indices = @transform_1, window_bounds = array<i64: 1, 16, 128>}, {pipeline_mode = #tpu.pipeline_mode<synchronous>, transform_indices = @transform_2, window_bounds = array<i64: 32, 16>}, {pipeline_mode = #tpu.pipeline_mode<synchronous>, transform_indices = @transform_3, window_bounds = array<i64: 32, 1>}, {pipeline_mode = #tpu.pipeline_mode<synchronous>, transform_indices = @transform_4, window_bounds = array<i64: 128, 1>}, {transform_indices = @transform_5, window_bounds = array<i64: 1>}, {transform_indices = @transform_6, window_bounds = array<i64: 1, 16, 128>}]} {
    %c0_i32 = arith.constant 0 : i32
    %0 = arith.cmpi eq, %arg1, %c0_i32 : i32
    %1 = arith.extui %0 : i1 to i32
    %c0_i32_0 = arith.constant 0 : i32
    %2 = arith.cmpi ne, %1, %c0_i32_0 : i32
    scf.if %2 {
      %c0_17 = arith.constant 0 : index
      %c0_18 = arith.constant 0 : index
      %35 = vector.load %arg4[%c0_17, %c0_18] : memref<32x16xbf16, #tpu.memory_space<vmem>>, vector<32x16xbf16>
      %c0_19 = arith.constant 0 : index
      %c0_20 = arith.constant 0 : index
      %c0_21 = arith.constant 0 : index
      %36 = vector.load %arg2[%c0_19, %c0_20, %c0_21] : memref<1x16x128xbf16, #tpu.memory_space<vmem>>, vector<1x16x128xbf16>
      %37 = vector.shape_cast %36 : vector<1x16x128xbf16> to vector<16x128xbf16>
      %cst_22 = arith.constant dense<0.000000e+00> : vector<32x128xf32>
      %38 = tpu.matmul %35, %37, %cst_22 {dimension_numbers = #tpu.dot_dimension_numbers<[1], [0], [0], [1], [0, 0, 1, 1], [], []>} : vector<32x16xbf16>, vector<16x128xbf16>, vector<32x128xf32> -> vector<32x128xf32>
      %c0_23 = arith.constant 0 : index
      %c0_24 = arith.constant 0 : index
      %39 = vector.load %arg5[%c0_23, %c0_24] : memref<32x1xf32, #tpu.memory_space<vmem>>, vector<32x1xf32>
      %40 = vector.broadcast %39 : vector<32x1xf32> to vector<32x128xf32>
      %41 = arith.addf %38, %40 : vector<32x128xf32>
      %42 = arith.truncf %41 : vector<32x128xf32> to vector<32x128xbf16>
      %c0_25 = arith.constant 0 : index
      %c0_26 = arith.constant 0 : index
      %43 = vector.load %arg9[%c0_25, %c0_26] : memref<32x128xbf16, #tpu.memory_space<vmem>>, vector<32x128xbf16>
      tpu.vector_store %arg9[%c0_25, %c0_26], %42 {strides = array<i32>} : memref<32x128xbf16, #tpu.memory_space<vmem>>, vector<32x128xbf16>,
    } else {
    }
    %c128_i32 = arith.constant 128 : i32
    %3 = arith.muli %arg1, %c128_i32 : i32
    %4 = tpu.assume_multiple %3, 128 : i32
    %c0 = arith.constant 0 : index
    %5 = arith.index_cast %4 : i32 to index
    %6 = vector.load %arg9[%c0, %5] : memref<32x128xbf16, #tpu.memory_space<vmem>>, vector<16x128xbf16>
    %c16 = arith.constant 16 : index
    %c0_1 = arith.constant 0 : index
    %7 = vector.load %arg9[%c16, %c0_1] : memref<32x128xbf16, #tpu.memory_space<vmem>>, vector<16x128xbf16>
    %cst = arith.constant dense<0.000000e+00> : vector<128x128xf32>
    %8 = tpu.matmul %7, %6, %cst {dimension_numbers = #tpu.dot_dimension_numbers<[0], [0], [1], [1], [0, 1, 1, 1], [], []>} : vector<16x128xbf16>, vector<16x128xbf16>, vector<128x128xf32> -> vector<128x128xf32>
    %c0_2 = arith.constant 0 : index
    %c0_3 = arith.constant 0 : index
    %9 = vector.load %arg6[%c0_2, %c0_3] : memref<128x1xf32, #tpu.memory_space<vmem>>, vector<128x1xf32>
    %10 = vector.broadcast %9 : vector<128x1xf32> to vector<128x128xf32>
    %11 = arith.addf %8, %10 : vector<128x128xf32>
    %cst_4 = arith.constant dense<0xFF800000> : vector<128xf32>
    %12 = vector.multi_reduction <maximumf>, %11, %cst_4 [0] : vector<128x128xf32> to vector<128xf32>
    %13 = vector.shape_cast %12 : vector<128xf32> to vector<1x128xf32>
    %14 = vector.broadcast %13 : vector<1x128xf32> to vector<128x128xf32>
    %15 = arith.subf %11, %14 : vector<128x128xf32>
    %16 = math.exp %15 : vector<128x128xf32>
    %cst_5 = arith.constant dense<0.000000e+00> : vector<128xf32>
    %17 = vector.multi_reduction <add>, %16, %cst_5 [0] : vector<128x128xf32> to vector<128xf32>
    %18 = vector.shape_cast %17 : vector<128xf32> to vector<1x128xf32>
    %c0_6 = arith.constant 0 : index
    %c0_7 = arith.constant 0 : index
    %c0_8 = arith.constant 0 : index
    %19 = vector.load %arg2[%c0_6, %c0_7, %c0_8] : memref<1x16x128xbf16, #tpu.memory_space<vmem>>, vector<1x16x128xbf16>
    %20 = vector.shape_cast %19 : vector<1x16x128xbf16> to vector<16x128xbf16>
    %21 = arith.truncf %16 : vector<128x128xf32> to vector<128x128xbf16>
    %cst_9 = arith.constant dense<0.000000e+00> : vector<16x128xf32>
    %22 = tpu.matmul %20, %21, %cst_9 {dimension_numbers = #tpu.dot_dimension_numbers<[1], [0], [0], [1], [0, 0, 1, 1], [], []>} : vector<16x128xbf16>, vector<128x128xbf16>, vector<16x128xf32> -> vector<16x128xf32>
    %23 = tpu.reciprocal %18 {approx = true} : vector<1x128xf32> -> vector<1x128xf32>
    %24 = vector.broadcast %23 : vector<1x128xf32> to vector<16x128xf32>
    %25 = arith.mulf %22, %24 : vector<16x128xf32>
    %c0_10 = arith.constant 0 : index
    %26 = memref.load %arg7[%c0_10] : memref<1xf32, #tpu.memory_space<smem>>
    %27 = vector.broadcast %26 : f32 to vector<16x128xf32>
    %28 = arith.mulf %27, %25 : vector<16x128xf32>
    %c0_11 = arith.constant 0 : index
    %c0_12 = arith.constant 0 : index
    %c0_13 = arith.constant 0 : index
    %29 = vector.load %arg3[%c0_11, %c0_12, %c0_13] : memref<1x16x128xf32, #tpu.memory_space<vmem>>, vector<1x16x128xf32>
    %30 = vector.shape_cast %29 : vector<1x16x128xf32> to vector<16x128xf32>
    %31 = arith.addf %28, %30 : vector<16x128xf32>
    %c0_14 = arith.constant 0 : index
    %c0_15 = arith.constant 0 : index
    %c0_16 = arith.constant 0 : index
    %32 = vector.load %arg8[%c0_14, %c0_15, %c0_16] : memref<1x16x128xf32, #tpu.memory_space<vmem>>, vector<1x16x128xf32>
    %33 = vector.shape_cast %32 : vector<1x16x128xf32> to vector<16x128xf32>
    %34 = vector.shape_cast %31 : vector<16x128xf32> to vector<1x16x128xf32>
    tpu.vector_store %arg8[%c0_14, %c0_15, %c0_16], %34 {strides = array<i32>} : memref<1x16x128xf32, #tpu.memory_space<vmem>>, vector<1x16x128xf32>,
    return
  }
  func.func @transform_0(%arg0: i32, %arg1: i32) -> (i32, i32, i32) {
    %c0_i32 = arith.constant 0 : i32
    %c0_i32_0 = arith.constant 0 : i32
    %c0_i32_1 = arith.constant 0 : i32
    return %arg0, %c0_i32, %c0_i32_0 : i32, i32, i32
  }
  func.func @transform_1(%arg0: i32, %arg1: i32) -> (i32, i32, i32) {
    %c0_i32 = arith.constant 0 : i32
    %c0_i32_0 = arith.constant 0 : i32
    return %arg0, %c0_i32, %arg1 : i32, i32, i32
  }
  func.func @transform_2(%arg0: i32, %arg1: i32) -> (i32, i32) {
    %c0_i32 = arith.constant 0 : i32
    %c0_i32_0 = arith.constant 0 : i32
    %c0_i32_1 = arith.constant 0 : i32
    return %c0_i32, %c0_i32_0 : i32, i32
  }
  func.func @transform_3(%arg0: i32, %arg1: i32) -> (i32, i32) {
    %c0_i32 = arith.constant 0 : i32
    %c0_i32_0 = arith.constant 0 : i32
    %c0_i32_1 = arith.constant 0 : i32
    return %c0_i32, %c0_i32_0 : i32, i32
  }
  func.func @transform_4(%arg0: i32, %arg1: i32) -> (i32, i32) {
    %c0_i32 = arith.constant 0 : i32
    %c0_i32_0 = arith.constant 0 : i32
    %c0_i32_1 = arith.constant 0 : i32
    return %c0_i32, %c0_i32_0 : i32, i32
  }
  func.func @transform_5(%arg0: i32, %arg1: i32) -> i32 {
    %c0_i32 = arith.constant 0 : i32
    %c0_i32_0 = arith.constant 0 : i32
    return %c0_i32 : i32
  }
  func.func @transform_6(%arg0: i32, %arg1: i32) -> (i32, i32, i32) {
    %c0_i32 = arith.constant 0 : i32
    %c0_i32_0 = arith.constant 0 : i32
    return %arg0, %c0_i32, %arg1 : i32, i32, i32
  }
}

</mosaic_0001>

<llo_original>
// kernel: tpu_custom_call.1
$region0: #{tpu_custom_call.1}
  #allocation0 [shape = 'u32[]', space=smem, size = 0x4, offset = 0x4, fixed_abs, tag = 'smem constant byte address 0x4 - core index']
  #allocation1 [shape = 'u32[72,128]{1,0:T(1,128)}', space=vmem, size = 0x9000, scoped, tag = 'internal scratch']
  #allocation2 [shape = 'bf16[32,128]{1,0:T(8,128)(2,1)}', space=vmem, size = 0x2000, scoped, tag = 'scratch operand']
  #allocation3 [shape = 'f32[1]{0:T(128)S(6)}', space=smem, size = 0x200, scoped, tag = 'scoped memory for tpu_custom_call.1']
  %s0 = inlined_call_operand.vmem [shape: bf16[2,16,128], index: 0, kind: input, shape index: {}]
  %s1 = inlined_call_operand.vmem [shape: f32[2,16,128], index: 1, kind: input, shape index: {}]
  %s2 = inlined_call_operand.vmem [shape: bf16[32,16], index: 2, kind: input, shape index: {}]
  %s3 = inlined_call_operand.vmem [shape: f32[32,1], index: 3, kind: input, shape index: {}]
  %s4 = inlined_call_operand.vmem [shape: f32[128,1], index: 4, kind: input, shape index: {}]
  %s5 = inlined_call_operand.<no memory space> [shape: f32[1], index: 5, kind: input, shape index: {}]
  %s6 = inlined_call_operand.hbm [shape: f32[2,16,128], index: 6, kind: output, shape index: {}]
  %s7 = sld [smem:[#allocation0]]
  $region61: #{tpu_custom_call.1} parent=0
    _
  %s9 = ssub.s32 1, %s7
  %s10 = scalar_select 0, %s9, %s7
  %11 = sst [smem:[#allocation3]] %s5
  $region1: #{tpu_custom_call.1} parent=0
    #allocation4 [shape = 'u8[16384]{0}', space=vmem, size = 0x4000, scoped, tag = 'output window, operand 0']
    #allocation5 [shape = 's32[2]{0}', space=sflag, size = 0x8, scoped, tag = 'scoped memory for tpu_custom_call.1']
    %12 = vsyncpa [#allocation5], 0
    %s13 = scalar_lea.sflag [#allocation5], 1
    %14 = vsyncpa %s13, 0
    loop: start=0, step=1, limit=4
    $region2: #{tpu_custom_call.1} parent=1 // loop_pre_header
      _
    $region3: #{tpu_custom_call.1} parent=1 // loop_header
      %s16 = sphi 0, %s20
      %p17 = scmp.ge.s32.totalorder %s16, 4
      %s23 = sphi 0, %s35
      %s24 = sphi 0, %s31
      %s25 = sphi 0, %s23
      %s26 = sphi 0, %s24
      %s27 = sphi 0, %s25
      %s28 = sphi 0, %s26
      %s38 = sphi 0, %s40
      %s41 = sphi 0, %s38
      %s42 = sphi 0, %s41
      %s58 = sphi 0, %s42
      %s66 = sphi 0, %s68
      %s69 = sphi 0, %s66
      %s70 = sphi 0, %s69
      %s86 = sphi 0, %s70
      %s90 = sphi 0, %s90
      %s92 = sphi 0, %s90
      %s93 = sphi 0, %s92
      %s107 = sphi 0, %s93
      %s111 = sphi 0, %s111
      %s113 = sphi 0, %s111
      %s114 = sphi 0, %s113
      %s128 = sphi 0, %s114
      %s132 = sphi 0, %s132
      %s134 = sphi 0, %s132
      %s135 = sphi 0, %s134
      %s149 = sphi 0, %s135
      %s153 = sphi 0, %s153
      %s155 = sphi 0, %s153
      %s156 = sphi 0, %s155
      %s170 = sphi 0, %s156
      %s178 = sphi 0, %s180
      %s181 = sphi 0, %s178
      %s182 = sphi 0, %s181
      %s198 = sphi 0, %s182
    $region4: #{tpu_custom_call.1} parent=1 // loop_header_branch
      %19 = sbr.rel (%p17) target = $region8
    $region5: #{tpu_custom_call.1} parent=1 // loop_body
      %s21 = ssub.s32 %s16, 1
      %s22 = ssub.s32 %s16, 2
      %s29 = sadd.s32 1, %s24
      %p30 = scmp.ge.s32.totalorder %s29, 1
      %s31 = scalar_select %p30, 0, %s29
      %s32 = sadd.s32 1, %s23
      %s33 = scalar_select %p30, %s32, %s23
      %p34 = scmp.ge.s32.totalorder %s33, 2
      %s35 = scalar_select %p34, 0, %s33
      %s36 = ssub.s32 %s23, %s35
      %p37 = scmp.eq.s32.totalorder %s36, 0
      %s39 = sadd.s32 %s38, 1
      %s40 = scalar_select %p37, %s38, %s39
      %p43 = pneg %p37
      %p44 = scmp.eq.s32.totalorder %s16, 1
      %p45 = por %p43, %p44
      %p46 = scmp.ne.s32.totalorder %s38, %s41
      %p47 = scmp.eq.s32.totalorder %s16, 0
      %p48 = por %p46, %p47
      %p49 = scmp.ne.s32.totalorder %s38, %s41
      %p50 = scmp.eq.s32.totalorder %s21, 1
      %p51 = por %p49, %p50
      %p52 = scmp.ne.s32.totalorder %s41, %s42
      %p53 = scmp.eq.s32.totalorder %s21, 0
      %p54 = por %p52, %p53
      %p55 = scmp.ne.s32.totalorder %s41, %s42
      %p56 = scmp.eq.s32.totalorder %s22, 1
      %p57 = por %p55, %p56
      %p59 = scmp.ne.s32.totalorder %s42, %s58
      %p60 = scmp.eq.s32.totalorder %s22, 0
      %p61 = por %p59, %p60
      %s62 = ssub.s32 %s23, %s35
      %s63 = ssub.s32 %s24, %s31
      %s64 = sor.u32 %s62, %s63
      %p65 = scmp.eq.s32.totalorder %s64, 0
      %s67 = sadd.s32 %s66, 1
      %s68 = scalar_select %p65, %s66, %s67
      %p71 = pneg %p65
      %p72 = scmp.eq.s32.totalorder %s16, 1
      %p73 = por %p71, %p72
      %p74 = scmp.ne.s32.totalorder %s66, %s69
      %p75 = scmp.eq.s32.totalorder %s16, 0
      %p76 = por %p74, %p75
      %p77 = scmp.ne.s32.totalorder %s66, %s69
      %p78 = scmp.eq.s32.totalorder %s21, 1
      %p79 = por %p77, %p78
      %p80 = scmp.ne.s32.totalorder %s69, %s70
      %p81 = scmp.eq.s32.totalorder %s21, 0
      %p82 = por %p80, %p81
      %p83 = scmp.ne.s32.totalorder %s69, %s70
      %p84 = scmp.eq.s32.totalorder %s22, 1
      %p85 = por %p83, %p84
      %p87 = scmp.ne.s32.totalorder %s70, %s86
      %p88 = scmp.eq.s32.totalorder %s22, 0
      %p89 = por %p87, %p88
      %s91 = sadd.s32 %s90, 1
      %p94 = scmp.eq.s32.totalorder %s16, 1
      %p95 = scmp.ne.s32.totalorder %s90, %s92
      %p96 = scmp.eq.s32.totalorder %s16, 0
      %p97 = por %p95, %p96
      %p98 = scmp.ne.s32.totalorder %s90, %s92
      %p99 = scmp.eq.s32.totalorder %s21, 1
      %p100 = por %p98, %p99
      %p101 = scmp.ne.s32.totalorder %s92, %s93
      %p102 = scmp.eq.s32.totalorder %s21, 0
      %p103 = por %p101, %p102
      %p104 = scmp.ne.s32.totalorder %s92, %s93
      %p105 = scmp.eq.s32.totalorder %s22, 1
      %p106 = por %p104, %p105
      %p108 = scmp.ne.s32.totalorder %s93, %s107
      %p109 = scmp.eq.s32.totalorder %s22, 0
      %p110 = por %p108, %p109
      %s112 = sadd.s32 %s111, 1
      %p115 = scmp.eq.s32.totalorder %s16, 1
      %p116 = scmp.ne.s32.totalorder %s111, %s113
      %p117 = scmp.eq.s32.totalorder %s16, 0
      %p118 = por %p116, %p117
      %p119 = scmp.ne.s32.totalorder %s111, %s113
      %p120 = scmp.eq.s32.totalorder %s21, 1
      %p121 = por %p119, %p120
      %p122 = scmp.ne.s32.totalorder %s113, %s114
      %p123 = scmp.eq.s32.totalorder %s21, 0
      %p124 = por %p122, %p123
      %p125 = scmp.ne.s32.totalorder %s113, %s114
      %p126 = scmp.eq.s32.totalorder %s22, 1
      %p127 = por %p125, %p126
      %p129 = scmp.ne.s32.totalorder %s114, %s128
      %p130 = scmp.eq.s32.totalorder %s22, 0
      %p131 = por %p129, %p130
      %s133 = sadd.s32 %s132, 1
      %p136 = scmp.eq.s32.totalorder %s16, 1
      %p137 = scmp.ne.s32.totalorder %s132, %s134
      %p138 = scmp.eq.s32.totalorder %s16, 0
      %p139 = por %p137, %p138
      %p140 = scmp.ne.s32.totalorder %s132, %s134
      %p141 = scmp.eq.s32.totalorder %s21, 1
      %p142 = por %p140, %p141
      %p143 = scmp.ne.s32.totalorder %s134, %s135
      %p144 = scmp.eq.s32.totalorder %s21, 0
      %p145 = por %p143, %p144
      %p146 = scmp.ne.s32.totalorder %s134, %s135
      %p147 = scmp.eq.s32.totalorder %s22, 1
      %p148 = por %p146, %p147
      %p150 = scmp.ne.s32.totalorder %s135, %s149
      %p151 = scmp.eq.s32.totalorder %s22, 0
      %p152 = por %p150, %p151
      %s154 = sadd.s32 %s153, 1
      %p157 = scmp.eq.s32.totalorder %s16, 1
      %p158 = scmp.ne.s32.totalorder %s153, %s155
      %p159 = scmp.eq.s32.totalorder %s16, 0
      %p160 = por %p158, %p159
      %p161 = scmp.ne.s32.totalorder %s153, %s155
      %p162 = scmp.eq.s32.totalorder %s21, 1
      %p163 = por %p161, %p162
      %p164 = scmp.ne.s32.totalorder %s155, %s156
      %p165 = scmp.eq.s32.totalorder %s21, 0
      %p166 = por %p164, %p165
      %p167 = scmp.ne.s32.totalorder %s155, %s156
      %p168 = scmp.eq.s32.totalorder %s22, 1
      %p169 = por %p167, %p168
      %p171 = scmp.ne.s32.totalorder %s156, %s170
      %p172 = scmp.eq.s32.totalorder %s22, 0
      %p173 = por %p171, %p172
      %s174 = ssub.s32 %s23, %s35
      %s175 = ssub.s32 %s24, %s31
      %s176 = sor.u32 %s174, %s175
      %p177 = scmp.eq.s32.totalorder %s176, 0
      %s179 = sadd.s32 %s178, 1
      %s180 = scalar_select %p177, %s178, %s179
      %p183 = pneg %p177
      %p184 = scmp.eq.s32.totalorder %s16, 1
      %p185 = por %p183, %p184
      %p186 = scmp.ne.s32.totalorder %s178, %s181
      %p187 = scmp.eq.s32.totalorder %s16, 0
      %p188 = por %p186, %p187
      %p189 = scmp.ne.s32.totalorder %s178, %s181
      %p190 = scmp.eq.s32.totalorder %s21, 1
      %p191 = por %p189, %p190
      %p192 = scmp.ne.s32.totalorder %s181, %s182
      %p193 = scmp.eq.s32.totalorder %s21, 0
      %p194 = por %p192, %p193
      %p195 = scmp.ne.s32.totalorder %s181, %s182
      %p196 = scmp.eq.s32.totalorder %s22, 1
      %p197 = por %p195, %p196
      %p199 = scmp.ne.s32.totalorder %s182, %s198
      %p200 = scmp.eq.s32.totalorder %s22, 0
      %p201 = por %p199, %p200
      %p202 = scmp.le.s32.totalorder 1, %s16
      %p203 = scmp.lt.s32.totalorder %s16, 3
      %p204 = pnand %p202, %p203
      %p205 = pneg %p204
      // Predicated region
      $region9: #{tpu_custom_call.1} parent=5 // pred_check
        _
      $region10: #{tpu_custom_call.1} parent=5 // pred_check_branch
        %207 = sbr.rel (%p204) target = $region12
      $region11: #{tpu_custom_call.1} parent=5 // pred_region
        %s208 = ssub.s32 %s16, 1
        // Predicated region
        $region13: #{tpu_custom_call.1} parent=11 // pred_check
          %p209 = pneg %p103
        $region14: #{tpu_custom_call.1} parent=11 // pred_check_branch
          %211 = sbr.rel (%p209) target = $region16
        $region15: #{tpu_custom_call.1} parent=11 // pred_region
          _
        $region16: #{tpu_custom_call.1} parent=11 // pred_fallthru
          _
        // Predicated region
        $region17: #{tpu_custom_call.1} parent=11 // pred_check
          %p212 = pneg %p124
        $region18: #{tpu_custom_call.1} parent=11 // pred_check_branch
          %214 = sbr.rel (%p212) target = $region20
        $region19: #{tpu_custom_call.1} parent=11 // pred_region
          _
        $region20: #{tpu_custom_call.1} parent=11 // pred_fallthru
          _
        // Predicated region
        $region21: #{tpu_custom_call.1} parent=11 // pred_check
          %p215 = pneg %p145
        $region22: #{tpu_custom_call.1} parent=11 // pred_check_branch
          %217 = sbr.rel (%p215) target = $region24
        $region23: #{tpu_custom_call.1} parent=11 // pred_region
          _
        $region24: #{tpu_custom_call.1} parent=11 // pred_fallthru
          _
        // Predicated region
        $region25: #{tpu_custom_call.1} parent=11 // pred_check
          %p218 = pneg %p166
        $region26: #{tpu_custom_call.1} parent=11 // pred_check_branch
          %220 = sbr.rel (%p218) target = $region28
        $region27: #{tpu_custom_call.1} parent=11 // pred_region
          _
        $region28: #{tpu_custom_call.1} parent=11 // pred_fallthru
          _
      $region12: #{tpu_custom_call.1} parent=5 // pred_fallthru
        _
      %p221 = scmp.lt.s32.totalorder %s16, 2
      // Predicated region
      $region29: #{tpu_custom_call.1} parent=5 // pred_check
        %p222 = pneg %p221
      $region30: #{tpu_custom_call.1} parent=5 // pred_check_branch
        %224 = sbr.rel (%p222) target = $region32
      $region31: #{tpu_custom_call.1} parent=5 // pred_region
        // Predicated region
        $region33: #{tpu_custom_call.1} parent=31 // pred_check
          %p225 = pneg %p48
        $region34: #{tpu_custom_call.1} parent=31 // pred_check_branch
          %227 = sbr.rel (%p225) target = $region36
        $region35: #{tpu_custom_call.1} parent=31 // pred_region
          %p228 = scmp.lt.s32.totalorder %s23, 1
          %s229 = scalar_select %p228, %s23, 1
          %s230 = smul.addr %s229, 2
          %s231 = smul.addr %s230, 4
          %s232 = scalar_lea.vmem %s0, %s231
        $region36: #{tpu_custom_call.1} parent=31 // pred_fallthru
          _
        // Predicated region
        $region37: #{tpu_custom_call.1} parent=31 // pred_check
          %p233 = pneg %p76
        $region38: #{tpu_custom_call.1} parent=31 // pred_check_branch
          %235 = sbr.rel (%p233) target = $region40
        $region39: #{tpu_custom_call.1} parent=31 // pred_region
          %p236 = scmp.lt.s32.totalorder %s23, 1
          %s237 = scalar_select %p236, %s23, 1
          %p238 = scmp.lt.s32.totalorder %s24, 0
          %s239 = scalar_select %p238, %s24, 0
          %s240 = smul.addr %s237, 2
          %s241 = sadd.s32 %s239, %s240
          %s242 = smul.addr %s241, 8
          %s243 = scalar_lea.vmem %s1, %s242
        $region40: #{tpu_custom_call.1} parent=31 // pred_fallthru
          _
      $region32: #{tpu_custom_call.1} parent=5 // pred_fallthru
        _
      %p244 = scmp.le.s32.totalorder 1, %s16
      %p245 = scmp.lt.s32.totalorder %s16, 3
      %p246 = pnand %p244, %p245
      %p247 = pneg %p246
      // Predicated region
      $region41: #{tpu_custom_call.1} parent=5 // pred_check
        _
      $region42: #{tpu_custom_call.1} parent=5 // pred_check_branch
        %249 = sbr.rel (%p246) target = $region44
      $region43: #{tpu_custom_call.1} parent=5 // pred_region
        %s250 = ssub.s32 %s16, 1
        %p251 = scmp.lt.s32.totalorder %s25, 1
        %s252 = scalar_select %p251, %s25, 1
        %s253 = smul.addr %s252, 2
        %s254 = smul.addr %s253, 4
        %s255 = scalar_lea.vmem %s0, %s254
        %p256 = pneg %p54
        %p257 = pneg %p51
        %p258 = scmp.lt.s32.totalorder %s25, 1
        %s259 = scalar_select %p258, %s25, 1
        %p260 = scmp.lt.s32.totalorder %s26, 0
        %s261 = scalar_select %p260, %s26, 0
        %s262 = smul.addr %s259, 2
        %s263 = sadd.s32 %s261, %s262
        %s264 = smul.addr %s263, 8
        %s265 = scalar_lea.vmem %s1, %s264
        %p266 = pneg %p82
        %p267 = pneg %p79
        %p268 = pneg %p103
        %p269 = pneg %p100
        %p270 = pneg %p124
        %p271 = pneg %p121
        %p272 = pneg %p145
        %p273 = pneg %p142
        %p274 = pneg %p166
        %p275 = pneg %p163
        %p276 = pneg %p194
        %p277 = pneg %p191
        %s278 = sand.u32 %s181, 1
        %s279 = scalar_lea.sflag [#allocation5], %s278
        %s280 = sand.u32 %s181, 1
        %s281 = smul.addr %s280, 16
        %s282 = scalar_lea.vmem [#allocation4], %s281
        %p283 = scmp.lt.s32.totalorder %s25, 1
        %s284 = scalar_select %p283, %s25, 1
        %s285 = smul.addr %s284, 2
        %s286 = smul.addr %s285, 4
        %s287 = scalar_lea.vmem %s0, %s286
        %p288 = scmp.lt.s32.totalorder %s25, 1
        %s289 = scalar_select %p288, %s25, 1
        %p290 = scmp.lt.s32.totalorder %s26, 0
        %s291 = scalar_select %p290, %s26, 0
        %s292 = smul.addr %s289, 2
        %s293 = sadd.s32 %s291, %s292
        %s294 = smul.addr %s293, 8
        %s295 = scalar_lea.vmem %s1, %s294
        %p297 = scmp.eq.s32.totalorder %s26, 0
        // Predicated region
        $region45: #{tpu_custom_call.1} parent=43 // pred_check
          %p298 = pneg %p297
        $region46: #{tpu_custom_call.1} parent=43 // pred_check_branch
          %300 = sbr.rel (%p298) target = $region48
        $region47: #{tpu_custom_call.1} parent=43 // pred_region
          %v301 = vld [vmem:[%s2] sm:$0xf]
          %v302 = vld [vmem:[%s2 + $0x4] sm:$0xf]
          %v303 = vld [vmem:[%s2 + $0x8] sm:$0xf]
          %v304 = vld [vmem:[%s2 + $0xc] sm:$0xf]
          %v305 = vld [vmem:[%s287] sm:$0xf]
          %v306 = vld [vmem:[%s287 + $0x4] sm:$0xf]
          %v307 = vld [vmem:[%s3] sm:$0xff]
          %v308 = vld [vmem:[%s3 + $0x8] sm:$0xff]
          %v309 = vld [vmem:[%s3 + $0x10] sm:$0xff]
          %v310 = vld [vmem:[%s3 + $0x18] sm:$0xff]
          %312 = vset.pattern.permute.xlu0 0
          %313 = vperm.xlu0 %312, %v307
          %v314 = vpop.permute.xlu0 %313
          %317 = vset.pattern.permute.xlu0 0
          %318 = vperm.xlu0 %317, %v308
          %v319 = vpop.permute.xlu0 %318
          %322 = vset.pattern.permute.xlu0 0
          %323 = vperm.xlu0 %322, %v309
          %v324 = vpop.permute.xlu0 %323
          %327 = vset.pattern.permute.xlu0 0
          %328 = vperm.xlu0 %327, %v310
          %v329 = vpop.permute.xlu0 %328
          %v335 = vunpack.c.l.b16 %v301
          %v336 = vunpack.c.l.b16 %v302
          %v337 = vunpack.c.l.b16 %v303
          %v338 = vunpack.c.l.b16 %v304
          %v339 = vpack.c.b16 %v336, %v335
          %v340 = vpack.c.b16 %v338, %v337
          %v343 = vunpack.c.l.b16 %v305
          %v344 = vunpack.c.l.b16 %v306
          %v345 = vpack.c.b16 %v344, %v343
          %vm347 = vcmask 130048
          %v349 = vsel %vm347, %v339, 0
          %v352 = vsel %vm347, %v340, 0
          %354 = vmatpush.bf16.msra.mxu0 0
          %355 = vmatpush.bf16.msra.mxu0 0
          %356 = vmatpush.bf16.msra.mxu0 0
          %357 = vmatpush.bf16.msra.mxu0 0
          %358 = vmatpush.bf16.msra.mxu0 0
          %359 = vmatpush.bf16.msra.mxu0 0
          %360 = vmatpush.bf16.msra.mxu0 0
          %361 = vmatpush.bf16.msra.mxu0 %v345
          %362 = vmatmul.bf16.gmra.mxu0 %v349
          %v363 = vpop.f32.mrf.mxu0
          %v364 = vadd.f32 %v314, %v363
          %v365 = vpop.f32.mrf.mxu0
          %v366 = vadd.f32 %v319, %v365
          %367 = vmatmul.bf16.gmra.mxu0 %v352
          %v368 = vpop.f32.mrf.mxu0
          %v369 = vadd.f32 %v324, %v368
          %v370 = vpop.f32.mrf.mxu0
          %v371 = vadd.f32 %v329, %v370
          %372 = vdwg.mxu0
          %v373 = vpack.c.bf16 %v364, %v364
          %v374 = vpack.c.bf16 %v366, %v366
          %v375 = vpack.c.bf16 %v369, %v369
          %v376 = vpack.c.bf16 %v371, %v371
          %377 = vst [vmem:[#allocation2] sm:$0xf] %v373
          %378 = vst [vmem:[#allocation2 + $0x4] sm:$0xf] %v374
          %379 = vst [vmem:[#allocation2 + $0x8] sm:$0xf] %v375
          %380 = vst [vmem:[#allocation2 + $0xc] sm:$0xf] %v376
        $region48: #{tpu_custom_call.1} parent=43 // pred_fallthru
          _
        %s381 = smul.u32 %s26, 128
        %s382 = sshra.s32 %s381, 7
        %s383 = sand.u32 %s381, 127
        %s384 = smul.addr %s382, 4
        %s385 = scalar_lea.vmem [#allocation2], %s384
        %v386 = vld [vmem:[%s385] sm:$0xf]
        %v387 = vld [vmem:[%s385 + $0x4] sm:$0xf]
        %v388 = vld [vmem:[#allocation2 + $0x8] sm:$0xf]
        %v389 = vld [vmem:[#allocation2 + $0xc] sm:$0xf]
        %v390 = vld [vmem:[%s4] sm:$0xff]
        %v391 = vld [vmem:[%s4 + $0x8] sm:$0xff]
        %v392 = vld [vmem:[%s4 + $0x10] sm:$0xff]
        %v393 = vld [vmem:[%s4 + $0x18] sm:$0xff]
        %v394 = vld [vmem:[%s4 + $0x20] sm:$0xff]
        %v395 = vld [vmem:[%s4 + $0x28] sm:$0xff]
        %v396 = vld [vmem:[%s4 + $0x30] sm:$0xff]
        %v397 = vld [vmem:[%s4 + $0x38] sm:$0xff]
        %v398 = vld [vmem:[%s4 + $0x40] sm:$0xff]
        %v399 = vld [vmem:[%s4 + $0x48] sm:$0xff]
        %v400 = vld [vmem:[%s4 + $0x50] sm:$0xff]
        %v401 = vld [vmem:[%s4 + $0x58] sm:$0xff]
        %v402 = vld [vmem:[%s4 + $0x60] sm:$0xff]
        %v403 = vld [vmem:[%s4 + $0x68] sm:$0xff]
        %v404 = vld [vmem:[%s4 + $0x70] sm:$0xff]
        %v405 = vld [vmem:[%s4 + $0x78] sm:$0xff]
        %407 = vset.pattern.permute.xlu0 0
        %408 = vperm.xlu0 %407, %v390
        %v409 = vpop.permute.xlu0 %408
        %412 = vset.pattern.permute.xlu0 0
        %413 = vperm.xlu0 %412, %v391
        %v414 = vpop.permute.xlu0 %413
        %417 = vset.pattern.permute.xlu0 0
        %418 = vperm.xlu0 %417, %v392
        %v419 = vpop.permute.xlu0 %418
        %422 = vset.pattern.permute.xlu0 0
        %423 = vperm.xlu0 %422, %v393
        %v424 = vpop.permute.xlu0 %423
        %427 = vset.pattern.permute.xlu0 0
        %428 = vperm.xlu0 %427, %v394
        %v429 = vpop.permute.xlu0 %428
        %432 = vset.pattern.permute.xlu0 0
        %433 = vperm.xlu0 %432, %v395
        %v434 = vpop.permute.xlu0 %433
        %437 = vset.pattern.permute.xlu0 0
        %438 = vperm.xlu0 %437, %v396
        %v439 = vpop.permute.xlu0 %438
        %442 = vset.pattern.permute.xlu0 0
        %443 = vperm.xlu0 %442, %v397
        %v444 = vpop.permute.xlu0 %443
        %447 = vset.pattern.permute.xlu0 0
        %448 = vperm.xlu0 %447, %v398
        %v449 = vpop.permute.xlu0 %448
        %452 = vset.pattern.permute.xlu0 0
        %453 = vperm.xlu0 %452, %v399
        %v454 = vpop.permute.xlu0 %453
        %457 = vset.pattern.permute.xlu0 0
        %458 = vperm.xlu0 %457, %v400
        %v459 = vpop.permute.xlu0 %458
        %462 = vset.pattern.permute.xlu0 0
        %463 = vperm.xlu0 %462, %v401
        %v464 = vpop.permute.xlu0 %463
        %467 = vset.pattern.permute.xlu0 0
        %468 = vperm.xlu0 %467, %v402
        %v469 = vpop.permute.xlu0 %468
        %472 = vset.pattern.permute.xlu0 0
        %473 = vperm.xlu0 %472, %v403
        %v474 = vpop.permute.xlu0 %473
        %477 = vset.pattern.permute.xlu0 0
        %478 = vperm.xlu0 %477, %v404
        %v479 = vpop.permute.xlu0 %478
        %482 = vset.pattern.permute.xlu0 0
        %483 = vperm.xlu0 %482, %v405
        %v484 = vpop.permute.xlu0 %483
        %v488 = vunpack.c.l.b16 %v388
        %v489 = vunpack.c.l.b16 %v389
        %v490 = vpack.c.b16 %v489, %v488
        %492 = vxpose.xlu0.c.b16.start [1/8] %v490, 128
        %493 = vxpose.xlu0.c.b16.cont [2/8] 0, 128
        %494 = vxpose.xlu0.c.b16.cont [3/8] 0, 128
        %495 = vxpose.xlu0.c.b16.cont [4/8] 0, 128
        %496 = vxpose.xlu0.c.b16.cont [5/8] 0, 128
        %497 = vxpose.xlu0.c.b16.cont [6/8] 0, 128
        %498 = vxpose.xlu0.c.b16.cont [7/8] 0, 128
        %499 = vxpose.xlu0.c.b16.end [8/8] 0, 128
        %v500 = vpop.trf.xlu0
        %v501 = vpop.trf.xlu0
        %v502 = vpop.trf.xlu0
        %v503 = vpop.trf.xlu0
        %v504 = vpop.trf.xlu0
        %v505 = vpop.trf.xlu0
        %v506 = vpop.trf.xlu0
        %v507 = vpop.trf.xlu0
        %v510 = vunpack.c.l.b16 %v386
        %v511 = vunpack.c.l.b16 %v387
        %v512 = vpack.c.b16 %v511, %v510
        %vm514 = vcmask 130048
        %v516 = vsel %vm514, %v500, 0
        %v519 = vsel %vm514, %v501, 0
        %v522 = vsel %vm514, %v502, 0
        %v525 = vsel %vm514, %v503, 0
        %v528 = vsel %vm514, %v504, 0
        %v531 = vsel %vm514, %v505, 0
        %v534 = vsel %vm514, %v506, 0
        %v537 = vsel %vm514, %v507, 0
        %539 = vmatpush.bf16.msra.mxu0 0
        %540 = vmatpush.bf16.msra.mxu0 0
        %541 = vmatpush.bf16.msra.mxu0 0
        %542 = vmatpush.bf16.msra.mxu0 0
        %543 = vmatpush.bf16.msra.mxu0 0
        %544 = vmatpush.bf16.msra.mxu0 0
        %545 = vmatpush.bf16.msra.mxu0 0
        %546 = vmatpush.bf16.msra.mxu0 %v512
        %547 = vmatmul.bf16.gmra.mxu0 %v516
        %v548 = vpop.f32.mrf.mxu0
        %v549 = vadd.f32 %v409, %v548
        %v550 = vpop.f32.mrf.mxu0
        %v551 = vadd.f32 %v414, %v550
        %552 = vmatmul.bf16.gmra.mxu0 %v519
        %v553 = vpop.f32.mrf.mxu0
        %v554 = vadd.f32 %v419, %v553
        %v555 = vpop.f32.mrf.mxu0
        %v556 = vadd.f32 %v424, %v555
        %557 = vmatmul.bf16.gmra.mxu0 %v522
        %v558 = vpop.f32.mrf.mxu0
        %v559 = vadd.f32 %v429, %v558
        %v560 = vpop.f32.mrf.mxu0
        %v561 = vadd.f32 %v434, %v560
        %562 = vmatmul.bf16.gmra.mxu0 %v525
        %v563 = vpop.f32.mrf.mxu0
        %v564 = vadd.f32 %v439, %v563
        %v565 = vpop.f32.mrf.mxu0
        %v566 = vadd.f32 %v444, %v565
        %567 = vmatmul.bf16.gmra.mxu0 %v528
        %v568 = vpop.f32.mrf.mxu0
        %v569 = vadd.f32 %v449, %v568
        %v570 = vpop.f32.mrf.mxu0
        %v571 = vadd.f32 %v454, %v570
        %572 = vmatmul.bf16.gmra.mxu0 %v531
        %v573 = vpop.f32.mrf.mxu0
        %v574 = vadd.f32 %v459, %v573
        %v575 = vpop.f32.mrf.mxu0
        %v576 = vadd.f32 %v464, %v575
        %577 = vmatmul.bf16.gmra.mxu0 %v534
        %v578 = vpop.f32.mrf.mxu0
        %v579 = vadd.f32 %v469, %v578
        %v580 = vpop.f32.mrf.mxu0
        %v581 = vadd.f32 %v474, %v580
        %582 = vmatmul.bf16.gmra.mxu0 %v537
        %v583 = vpop.f32.mrf.mxu0
        %v584 = vadd.f32 %v479, %v583
        %v585 = vpop.f32.mrf.mxu0
        %v586 = vadd.f32 %v484, %v585
        %587 = vdwg.mxu0
        %v588 = vmax.f32 %v549, %v559
        %v589 = vmax.f32 %v551, %v561
        %v590 = vmax.f32 %v554, %v564
        %v591 = vmax.f32 %v556, %v566
        %v592 = vmax.f32 %v588, %v569
        %v593 = vmax.f32 %v589, %v571
        %v594 = vmax.f32 %v590, %v574
        %v595 = vmax.f32 %v591, %v576
        %v596 = vmax.f32 %v592, %v579
        %v597 = vmax.f32 %v593, %v581
        %v598 = vmax.f32 %v594, %v584
        %v599 = vmax.f32 %v595, %v586
        %v600 = vmax.f32 %v596, %v597
        %v601 = vmax.f32 %v598, %v599
        %v602 = vmax.f32 %v600, %v601
        %v603 = vrot.slane %v602, 4
        %v604 = vmax.f32 %v602, %v603
        %v605 = vrot.slane %v604, 2
        %v606 = vmax.f32 %v604, %v605
        %v607 = vrot.slane %v606, 1
        %v608 = vmax.f32 %v606, %v607
        %v609 = vsub.f32 %v549, %v608
        %v610 = vsub.f32 %v551, %v608
        %v611 = vsub.f32 %v554, %v608
        %v612 = vsub.f32 %v556, %v608
        %v613 = vsub.f32 %v559, %v608
        %v614 = vsub.f32 %v561, %v608
        %v615 = vsub.f32 %v564, %v608
        %v616 = vsub.f32 %v566, %v608
        %v617 = vsub.f32 %v569, %v608
        %v618 = vsub.f32 %v571, %v608
        %v619 = vsub.f32 %v574, %v608
        %v620 = vsub.f32 %v576, %v608
        %v621 = vsub.f32 %v579, %v608
        %v622 = vsub.f32 %v581, %v608
        %v623 = vsub.f32 %v584, %v608
        %v624 = vsub.f32 %v586, %v608
        %v625 = vmul.f32 %v609, 1.442695
        %v626 = vpow.pop %v625
        %v627 = vmul.f32 %v610, 1.442695
        %v628 = vpow.pop %v627
        %v629 = vmul.f32 %v611, 1.442695
        %v630 = vpow.pop %v629
        %v631 = vmul.f32 %v612, 1.442695
        %v632 = vpow.pop %v631
        %v633 = vmul.f32 %v613, 1.442695
        %v634 = vpow.pop %v633
        %v635 = vmul.f32 %v614, 1.442695
        %v636 = vpow.pop %v635
        %v637 = vmul.f32 %v615, 1.442695
        %v638 = vpow.pop %v637
        %v639 = vmul.f32 %v616, 1.442695
        %v640 = vpow.pop %v639
        %v641 = vmul.f32 %v617, 1.442695
        %v642 = vpow.pop %v641
        %v643 = vmul.f32 %v618, 1.442695
        %v644 = vpow.pop %v643
        %v645 = vmul.f32 %v619, 1.442695
        %v646 = vpow.pop %v645
        %v647 = vmul.f32 %v620, 1.442695
        %v648 = vpow.pop %v647
        %v649 = vmul.f32 %v621, 1.442695
        %v650 = vpow.pop %v649
        %v651 = vmul.f32 %v622, 1.442695
        %v652 = vpow.pop %v651
        %v653 = vmul.f32 %v623, 1.442695
        %v654 = vpow.pop %v653
        %v655 = vmul.f32 %v624, 1.442695
        %v656 = vpow.pop %v655
        %v657 = vadd.f32 %v626, %v628
        %v658 = vadd.f32 %v657, %v630
        %v659 = vadd.f32 %v658, %v632
        %v660 = vadd.f32 %v659, %v634
        %v661 = vadd.f32 %v660, %v636
        %v662 = vadd.f32 %v661, %v638
        %v663 = vadd.f32 %v662, %v640
        %v664 = vadd.f32 %v663, %v642
        %v665 = vadd.f32 %v664, %v644
        %v666 = vadd.f32 %v665, %v646
        %v667 = vadd.f32 %v666, %v648
        %v668 = vadd.f32 %v667, %v650
        %v669 = vadd.f32 %v668, %v652
        %v670 = vadd.f32 %v669, %v654
        %v671 = vadd.f32 %v670, %v656
        %v672 = vrot.slane %v671, 4
        %v673 = vadd.f32 %v671, %v672
        %v674 = vrot.slane %v673, 2
        %v675 = vadd.f32 %v673, %v674
        %v676 = vrot.slane %v675, 1
        %v677 = vadd.f32 %v675, %v676
        %v678 = vld [vmem:[%s287] sm:$0xf]
        %v679 = vld [vmem:[%s287 + $0x4] sm:$0xf]
        %v680 = vpack.c.bf16 %v628, %v626
        %v681 = vpack.c.bf16 %v632, %v630
        %v682 = vpack.c.bf16 %v636, %v634
        %v683 = vpack.c.bf16 %v640, %v638
        %v684 = vpack.c.bf16 %v644, %v642
        %v685 = vpack.c.bf16 %v648, %v646
        %v686 = vpack.c.bf16 %v652, %v650
        %v687 = vpack.c.bf16 %v656, %v654
        %v690 = vunpack.c.l.b16 %v678
        %v691 = vunpack.c.l.b16 %v679
        %v692 = vpack.c.b16 %v691, %v690
        %694 = vmatpush.bf16.msra.mxu0 %v687
        %695 = vmatpush.bf16.msra.mxu0 %v686
        %696 = vmatpush.bf16.msra.mxu0 %v685
        %697 = vmatpush.bf16.msra.mxu0 %v684
        %698 = vmatpush.bf16.msra.mxu0 %v683
        %699 = vmatpush.bf16.msra.mxu0 %v682
        %700 = vmatpush.bf16.msra.mxu0 %v681
        %701 = vmatpush.bf16.msra.mxu0 %v680
        %702 = vmatmul.bf16.gmra.mxu0 %v692
        %v703 = vpop.f32.mrf.mxu0
        %v704 = vadd.f32 0.0, %v703
        %v705 = vpop.f32.mrf.mxu0
        %v706 = vadd.f32 0.0, %v705
        %707 = vdwg.mxu0
        %v708 = vrcp.pop %v677
        %v709 = vmul.f32 %v704, %v708
        %v710 = vmul.f32 %v706, %v708
        %s711 = sld [smem:[#allocation3]]
        %v712 = vstv %s711
        %v713 = vmul.f32 %v712, %v709
        %v714 = vmul.f32 %v712, %v710
        %v715 = vld [vmem:[%s295] sm:$0xff]
        %v716 = vld [vmem:[%s295 + $0x8] sm:$0xff]
        %v717 = vadd.f32 %v713, %v715
        %v718 = vadd.f32 %v714, %v716
        %719 = vst [vmem:[%s282] sm:$0xff] %v717
        %720 = vst [vmem:[%s282 + $0x8] sm:$0xff] %v718
        %s721 = sand.u32 %s181, 1
        %s722 = scalar_lea.sflag [#allocation5], %s721
        %s723 = sand.u32 %s181, 1
        %s724 = smul.addr %s723, 16
        %s725 = scalar_lea.vmem [#allocation4], %s724
        // Predicated region
        $region49: #{tpu_custom_call.1} parent=43 // pred_check
          %p726 = pneg %p191
        $region50: #{tpu_custom_call.1} parent=43 // pred_check_branch
          %728 = sbr.rel (%p726) target = $region52
        $region51: #{tpu_custom_call.1} parent=43 // pred_region
          %730 = vsyncadd %s722, 0
          %s731 = smul.addr %s25, 2
          %s732 = sadd.s32 %s26, %s731
          %s733 = smul.addr %s732, 8
          %s734 = scalar_lea.hbm %s6, %s733
          %s735 = sshll.u32 %s725, 4
          %s736 = int_to_ptr.vmem [resolvable:$true] %s735
          %s737 = sshll.u32 %s734, 4
          %s738 = int_to_ptr.hbm [resolvable:$true] %s737
          %743 = dma.vmem_to_hbm [thread:$0]  %s736, 256, %s738, %s722, 128, 128, 8
        $region52: #{tpu_custom_call.1} parent=43 // pred_fallthru
          _
      $region44: #{tpu_custom_call.1} parent=5 // pred_fallthru
        _
      %p744 = scmp.le.s32.totalorder 2, %s16
      // Predicated region
      $region53: #{tpu_custom_call.1} parent=5 // pred_check
        %p745 = pneg %p744
      $region54: #{tpu_custom_call.1} parent=5 // pred_check_branch
        %747 = sbr.rel (%p745) target = $region56
      $region55: #{tpu_custom_call.1} parent=5 // pred_region
        %s748 = ssub.s32 %s16, 2
        // Predicated region
        $region57: #{tpu_custom_call.1} parent=55 // pred_check
          %p749 = pneg %p197
        $region58: #{tpu_custom_call.1} parent=55 // pred_check_branch
          %751 = sbr.rel (%p749) target = $region60
        $region59: #{tpu_custom_call.1} parent=55 // pred_region
          %s752 = sand.u32 %s182, 1
          %s753 = scalar_lea.sflag [#allocation5], %s752
          %s754 = sand.u32 %s182, 1
          %s755 = smul.addr %s754, 16
          %s756 = scalar_lea.vmem [#allocation4], %s755
          %758 = dma.done %s753, 256
        $region60: #{tpu_custom_call.1} parent=55 // pred_fallthru
          _
      $region56: #{tpu_custom_call.1} parent=5 // pred_fallthru
        _
    $region6: #{tpu_custom_call.1} parent=1 // loop_footer
      %s20 = sadd.s32 1, %s16
    $region7: #{tpu_custom_call.1} parent=1 // loop_footer_branch
      %15 = sbr.rel target = $region3
    $region8: #{tpu_custom_call.1} parent=1 // loop_exit
      _
    %759 = vsyncpa [#allocation5], 1
    %s760 = scalar_lea.sflag [#allocation5], 1
    %761 = vsyncpa %s760, 1

</llo_original>
